<compile_context>
chip_gen: v6e
topology: v6e:2x2x1
jax: 0.10.0
libtpu: 0.0.40
codegen_flags: <defaults>
</compile_context>

<pallas_src>
import functools

import jax
import jax.numpy as jnp
from jax import lax
from jax.experimental import pallas as pl
from jax.experimental.pallas import tpu as pltpu


def _weighted_ce_kernel(pred_ref, tgt_ref, w_ref, num_ref, den_ref,
                        *, hw, k_blocks, need_mask):
    """Weighted NLL over one (C, K, 128) logits tile.

    pred_ref: (C, K, 128) float   logits tile (classes x lane-blocks x lanes)
    tgt_ref : (1, K, 128) int     target class indices (-1 / OOB => ignored)
    w_ref   : (C, 1, 1)   float32 per-class weights 1/(2*exp(alpha))
    num_ref : (8, 128)    float32 per-(n, j) partial: sum w[y] * nll
    den_ref : (8, 128)    float32 per-(n, j) partial: sum w[y]
    """
    C, K, _ = pred_ref.shape
    tgt = tgt_ref[0]                                          # (K, 128) int

    if need_mask:
        # Global pixel index of each element of this tile; pixels >= hw are
        # padding / grid overrun (possibly stale VMEM) and must not contribute.
        base = pl.program_id(1) * (k_blocks * 128)
        kk = lax.broadcasted_iota(jnp.int32, (K, 128), 0)
        ln = lax.broadcasted_iota(jnp.int32, (K, 128), 1)
        valid = (base + kk * 128 + ln) < hw                   # (K, 128) bool
    else:
        valid = None

    def load_class(c):
        lc = pred_ref[c].astype(jnp.float32)                  # (K, 128)
        if valid is not None:
            # Zero garbage lanes so max/exp stay finite (inf * 0 = NaN).
            lc = jnp.where(valid, lc, 0.0)
        return lc

    # Pass 1: running max over classes (depth-C VPU max on (K,128) slabs).
    m = load_class(0)
    for c in range(1, C):
        m = jnp.maximum(m, load_class(c))

    # Pass 2: exp-sum, logit-at-target, weight-at-target.  Working set is a
    # handful of (K,128) f32 slabs; the logits tile is re-read from VMEM.
    s = jnp.zeros((K, 128), jnp.float32)
    logit_t = jnp.zeros((K, 128), jnp.float32)
    w_t = jnp.zeros((K, 128), jnp.float32)
    for c in range(C):
        lc = load_class(c)
        s = s + jnp.exp(lc - m)
        sel = tgt == c
        logit_t = jnp.where(sel, lc, logit_t)
        w_t = jnp.where(sel, w_ref[c], w_t)
    if valid is not None:
        w_t = jnp.where(valid, w_t, 0.0)      # garbage targets -> zero weight

    lse = m + jnp.log(s)                                      # (K, 128)
    wnll = w_t * (lse - logit_t)                              # (K, 128)

    # Fold K -> 8 sublanes with pure vreg adds (K % 8 == 0 by construction);
    # the final 8x128 -> scalar reduce happens once in JAX.
    num_ref[...] = wnll.reshape(K // 8, 8, 128).sum(axis=0)
    den_ref[...] = w_t.reshape(K // 8, 8, 128).sum(axis=0)


def na_segmenter_loss(pred_nchw, target_nhw, alpha_param):
    """Weighted cross-entropy loss matching NaSegmenterV0.forward.

    pred_nchw   : (N, C, H, W) float logits (f32 or bf16 -- passed through)
    target_nhw  : (N, H, W)    int class indices in [0, C)
    alpha_param : (C,)         float, the nn.Parameter (na_alpha per class)
    """
    N, C, H, W = pred_nchw.shape
    HW = H * W

    pred3 = pred_nchw.reshape(N, C, HW)          # free: NCHW is contiguous
    tgt2 = target_nhw.reshape(N, HW)
    if not jnp.issubdtype(tgt2.dtype, jnp.integer):
        tgt2 = tgt2.astype(jnp.int32)
    # TODO(synk): int8/int16 targets pass through untouched (saves HBM bytes);
    # they need k_blocks % 32 == 0, which holds by construction below.

    # Lane-block count.  kt >= 32 and k_blocks % 32 == 0 keep every block
    # shape legal for f32/bf16 logits and int8..int32 targets and make the
    # (8,128) output fold exact.  A pad only triggers for tiny images or
    # HW % 128 != 0 -- and is then at most 4096 px.
    kt = max(pl.cdiv(HW, 128), 32)
    hw_pad = kt * 128
    if hw_pad != HW:
        pred3 = jnp.pad(pred3, ((0, 0), (0, 0), (0, hw_pad - HW)))
        tgt2 = jnp.pad(tgt2, ((0, 0), (0, hw_pad - HW)), constant_values=-1)

    # ~1 MiB logits tile per grid step (512 lane-blocks at f32, 1024 at bf16),
    # clamped to [256, 1024] lane-blocks, multiple of 32, and <= kt.
    tile_lb = (1 << 20) // (C * 128 * pred3.dtype.itemsize)
    tile_lb = (max(256, min(1024, tile_lb)) // 32) * 32
    k_blocks = min(tile_lb, (kt // 32) * 32)
    grid_j = pl.cdiv(kt, k_blocks)
    need_mask = (grid_j * k_blocks * 128) != HW   # any pixel index >= HW seen?

    pred4 = pred3.reshape(N, C, kt, 128)
    tgt4 = tgt2.reshape(N, 1, kt, 128)
    class_w = (1.0 / (2.0 * jnp.exp(alpha_param.astype(jnp.float32))))
    class_w = class_w.reshape(C, 1, 1)

    kernel = functools.partial(_weighted_ce_kernel, hw=HW,
                               k_blocks=k_blocks, need_mask=need_mask)

    out_bytes = 2 * N * grid_j * 8 * 128 * 4
    cost = pl.CostEstimate(
        flops=int(8 * (C + 1) * N * hw_pad),
        transcendentals=int((C + 1) * N * hw_pad),
        bytes_accessed=int(pred4.size * pred4.dtype.itemsize
                           + tgt4.size * tgt4.dtype.itemsize + out_bytes),
    )

    num_p, den_p = pl.pallas_call(
        kernel,
        out_shape=(
            jax.ShapeDtypeStruct((N, grid_j, 8, 128), jnp.float32),
            jax.ShapeDtypeStruct((N, grid_j, 8, 128), jnp.float32),
        ),
        grid=(N, grid_j),
        in_specs=[
            pl.BlockSpec((pl.Squeezed(), C, k_blocks, 128),
                         lambda n, j: (n, 0, j, 0)),              # logits tile
            pl.BlockSpec((pl.Squeezed(), 1, k_blocks, 128),
                         lambda n, j: (n, 0, j, 0)),              # target tile
            pl.BlockSpec((C, 1, 1), lambda n, j: (0, 0, 0)),      # class weights
        ],
        out_specs=(
            pl.BlockSpec((pl.Squeezed(), pl.Squeezed(), 8, 128),
                         lambda n, j: (n, j, 0, 0)),
            pl.BlockSpec((pl.Squeezed(), pl.Squeezed(), 8, 128),
                         lambda n, j: (n, j, 0, 0)),
        ),
        compiler_params=pltpu.CompilerParams(
            dimension_semantics=("parallel", "parallel"),
            vmem_limit_bytes=32 * 1024 * 1024,
        ),
        cost_estimate=cost,
    )(pred4, tgt4, class_w)

    # Final weighted-mean reduction: one tiny reduce in JAX.
    return jnp.sum(num_p) / jnp.sum(den_p)


def _reference_loss(pred_nchw, target_nhw, alpha_param):
    """Pure-JAX reference replicating F.cross_entropy(weight=..., reduction='mean')."""
    N, C, H, W = pred_nchw.shape
    pred2d = jnp.transpose(pred_nchw, (0, 2, 3, 1)).reshape(-1, C).astype(jnp.float32)
    tgt = target_nhw.reshape(-1)
    class_w = 1.0 / (2.0 * jnp.exp(alpha_param.astype(jnp.float32)))
    logp = jax.nn.log_softmax(pred2d, axis=-1)
    nll = -jnp.take_along_axis(logp, tgt[:, None], axis=-1)[:, 0]
    w = class_w[tgt]
    return jnp.sum(w * nll) / jnp.sum(w)


if __name__ == "__main__":
    # args: seg_n_classes=4, na_alpha=0.5  (deterministic in-script init)
    seg_n_classes = 4
    na_alpha = 0.5
    N, C, H, W = 2, seg_n_classes, 16, 16

    key = jax.random.PRNGKey(0)
    k_pred, k_tgt = jax.random.split(key)
    pred = jax.random.normal(k_pred, (N, C, H, W), dtype=jnp.float32)
    target = jax.random.randint(k_tgt, (N, H, W), 0, C, dtype=jnp.int32)
    alpha = jnp.full((seg_n_classes,), na_alpha, dtype=jnp.float32)

    loss_fn = jax.jit(na_segmenter_loss)
    loss = jax.block_until_ready(loss_fn(pred, target, alpha))
    ref = jax.block_until_ready(_reference_loss(pred, target, alpha))
    assert jnp.allclose(loss, ref, rtol=1e-5, atol=1e-5), (loss, ref)
    print("KERNEL_OK")
</pallas_src>

<mosaic_0001>
module attributes {stable_mosaic.version = 11 : i64} {
  func.func @_weighted_ce_kernel(%arg0: i32, %arg1: i32, %arg2: memref<1x4x32x128xf32, #tpu.memory_space<vmem>>, %arg3: memref<1x1x32x128xi32, #tpu.memory_space<vmem>>, %arg4: memref<4x1x1xf32, #tpu.memory_space<vmem>>, %arg5: memref<1x1x8x128xf32, #tpu.memory_space<vmem>>, %arg6: memref<1x1x8x128xf32, #tpu.memory_space<vmem>>) attributes {dimension_semantics = [#tpu.dimension_semantics<parallel>, #tpu.dimension_semantics<parallel>], iteration_bounds = array<i64: 2, 1>, scalar_prefetch = 0 : i64, scratch_operands = 0 : i64, tpu.core_type = #tpu.core_type<tc>, window_params = [{transform_indices = @transform_0, window_bounds = array<i64: 1, 4, 32, 128>}, {transform_indices = @transform_1, window_bounds = array<i64: 1, 1, 32, 128>}, {pipeline_mode = #tpu.pipeline_mode<synchronous>, transform_indices = @transform_2, window_bounds = array<i64: 4, 1, 1>}, {transform_indices = @transform_3, window_bounds = array<i64: 1, 1, 8, 128>}, {transform_indices = @transform_4, window_bounds = array<i64: 1, 1, 8, 128>}]} {
    %c0 = arith.constant 0 : index
    %c0_0 = arith.constant 0 : index
    %c0_1 = arith.constant 0 : index
    %c0_2 = arith.constant 0 : index
    %0 = vector.load %arg3[%c0, %c0_0, %c0_1, %c0_2] : memref<1x1x32x128xi32, #tpu.memory_space<vmem>>, vector<1x1x32x128xi32>
    %1 = vector.shape_cast %0 : vector<1x1x32x128xi32> to vector<32x128xi32>
    %c4096_i32 = arith.constant 4096 : i32
    %2 = arith.muli %arg1, %c4096_i32 : i32
    %3 = tpu.iota {dimensions = array<i32: 0>} : vector<32x128xi32>
    %4 = tpu.iota {dimensions = array<i32: 1>} : vector<32x128xi32>
    %c128_i32 = arith.constant 128 : i32
    %5 = vector.broadcast %c128_i32 : i32 to vector<32x128xi32>
    %6 = arith.muli %3, %5 : vector<32x128xi32>
    %7 = vector.broadcast %2 : i32 to vector<32x128xi32>
    %8 = arith.addi %7, %6 : vector<32x128xi32>
    %9 = arith.addi %8, %4 : vector<32x128xi32>
    %c256_i32 = arith.constant 256 : i32
    %10 = vector.broadcast %c256_i32 : i32 to vector<32x128xi32>
    %11 = arith.cmpi slt, %9, %10 : vector<32x128xi32>
    %c0_3 = arith.constant 0 : index
    %c0_4 = arith.constant 0 : index
    %c0_5 = arith.constant 0 : index
    %c0_6 = arith.constant 0 : index
    %12 = vector.load %arg2[%c0_3, %c0_4, %c0_5, %c0_6] : memref<1x4x32x128xf32, #tpu.memory_space<vmem>>, vector<1x1x32x128xf32>
    %13 = vector.shape_cast %12 : vector<1x1x32x128xf32> to vector<32x128xf32>
    %cst = arith.constant 0.000000e+00 : f32
    %14 = vector.broadcast %cst : f32 to vector<32x128xf32>
    %15 = arith.select %11, %13, %14 : vector<32x128xi1>, vector<32x128xf32>
    %c0_7 = arith.constant 0 : index
    %c1 = arith.constant 1 : index
    %c0_8 = arith.constant 0 : index
    %c0_9 = arith.constant 0 : index
    %16 = vector.load %arg2[%c0_7, %c1, %c0_8, %c0_9] : memref<1x4x32x128xf32, #tpu.memory_space<vmem>>, vector<1x1x32x128xf32>
    %17 = vector.shape_cast %16 : vector<1x1x32x128xf32> to vector<32x128xf32>
    %cst_10 = arith.constant 0.000000e+00 : f32
    %18 = vector.broadcast %cst_10 : f32 to vector<32x128xf32>
    %19 = arith.select %11, %17, %18 : vector<32x128xi1>, vector<32x128xf32>
    %20 = arith.maximumf %15, %19 : vector<32x128xf32>
    %c0_11 = arith.constant 0 : index
    %c2 = arith.constant 2 : index
    %c0_12 = arith.constant 0 : index
    %c0_13 = arith.constant 0 : index
    %21 = vector.load %arg2[%c0_11, %c2, %c0_12, %c0_13] : memref<1x4x32x128xf32, #tpu.memory_space<vmem>>, vector<1x1x32x128xf32>
    %22 = vector.shape_cast %21 : vector<1x1x32x128xf32> to vector<32x128xf32>
    %cst_14 = arith.constant 0.000000e+00 : f32
    %23 = vector.broadcast %cst_14 : f32 to vector<32x128xf32>
    %24 = arith.select %11, %22, %23 : vector<32x128xi1>, vector<32x128xf32>
    %25 = arith.maximumf %20, %24 : vector<32x128xf32>
    %c0_15 = arith.constant 0 : index
    %c3 = arith.constant 3 : index
    %c0_16 = arith.constant 0 : index
    %c0_17 = arith.constant 0 : index
    %26 = vector.load %arg2[%c0_15, %c3, %c0_16, %c0_17] : memref<1x4x32x128xf32, #tpu.memory_space<vmem>>, vector<1x1x32x128xf32>
    %27 = vector.shape_cast %26 : vector<1x1x32x128xf32> to vector<32x128xf32>
    %cst_18 = arith.constant 0.000000e+00 : f32
    %28 = vector.broadcast %cst_18 : f32 to vector<32x128xf32>
    %29 = arith.select %11, %27, %28 : vector<32x128xi1>, vector<32x128xf32>
    %30 = arith.maximumf %25, %29 : vector<32x128xf32>
    %cst_19 = arith.constant 0.000000e+00 : f32
    %31 = vector.broadcast %cst_19 : f32 to vector<32x128xf32>
    %cst_20 = arith.constant 0.000000e+00 : f32
    %32 = vector.broadcast %cst_20 : f32 to vector<32x128xf32>
    %cst_21 = arith.constant 0.000000e+00 : f32
    %33 = vector.broadcast %cst_21 : f32 to vector<32x128xf32>
    %c0_22 = arith.constant 0 : index
    %c0_23 = arith.constant 0 : index
    %c0_24 = arith.constant 0 : index
    %c0_25 = arith.constant 0 : index
    %34 = vector.load %arg2[%c0_22, %c0_23, %c0_24, %c0_25] : memref<1x4x32x128xf32, #tpu.memory_space<vmem>>, vector<1x1x32x128xf32>
    %35 = vector.shape_cast %34 : vector<1x1x32x128xf32> to vector<32x128xf32>
    %cst_26 = arith.constant 0.000000e+00 : f32
    %36 = vector.broadcast %cst_26 : f32 to vector<32x128xf32>
    %37 = arith.select %11, %35, %36 : vector<32x128xi1>, vector<32x128xf32>
    %38 = arith.subf %37, %30 : vector<32x128xf32>
    %39 = math.exp %38 : vector<32x128xf32>
    %40 = arith.addf %31, %39 : vector<32x128xf32>
    %c0_i32 = arith.constant 0 : i32
    %41 = vector.broadcast %c0_i32 : i32 to vector<32x128xi32>
    %42 = arith.cmpi eq, %1, %41 : vector<32x128xi32>
    %43 = arith.select %42, %37, %32 : vector<32x128xi1>, vector<32x128xf32>
    %c0_27 = arith.constant 0 : index
    %c0_28 = arith.constant 0 : index
    %c0_29 = arith.constant 0 : index
    %44 = vector.load %arg4[%c0_27, %c0_28, %c0_29] : memref<4x1x1xf32, #tpu.memory_space<vmem>>, vector<1x1x1xf32>
    %45 = vector.shape_cast %44 : vector<1x1x1xf32> to vector<1x1xf32>
    %46 = vector.shape_cast %45 : vector<1x1xf32> to vector<1x1xf32>
    %47 = vector.broadcast %46 : vector<1x1xf32> to vector<32x128xf32>
    %48 = arith.select %42, %47, %33 : vector<32x128xi1>, vector<32x128xf32>
    %c0_30 = arith.constant 0 : index
    %c1_31 = arith.constant 1 : index
    %c0_32 = arith.constant 0 : index
    %c0_33 = arith.constant 0 : index
    %49 = vector.load %arg2[%c0_30, %c1_31, %c0_32, %c0_33] : memref<1x4x32x128xf32, #tpu.memory_space<vmem>>, vector<1x1x32x128xf32>
    %50 = vector.shape_cast %49 : vector<1x1x32x128xf32> to vector<32x128xf32>
    %cst_34 = arith.constant 0.000000e+00 : f32
    %51 = vector.broadcast %cst_34 : f32 to vector<32x128xf32>
    %52 = arith.select %11, %50, %51 : vector<32x128xi1>, vector<32x128xf32>
    %53 = arith.subf %52, %30 : vector<32x128xf32>
    %54 = math.exp %53 : vector<32x128xf32>
    %55 = arith.addf %40, %54 : vector<32x128xf32>
    %c1_i32 = arith.constant 1 : i32
    %56 = vector.broadcast %c1_i32 : i32 to vector<32x128xi32>
    %57 = arith.cmpi eq, %1, %56 : vector<32x128xi32>
    %58 = arith.select %57, %52, %43 : vector<32x128xi1>, vector<32x128xf32>
    %c1_35 = arith.constant 1 : index
    %c0_36 = arith.constant 0 : index
    %c0_37 = arith.constant 0 : index
    %59 = vector.load %arg4[%c1_35, %c0_36, %c0_37] : memref<4x1x1xf32, #tpu.memory_space<vmem>>, vector<1x1x1xf32>
    %60 = vector.shape_cast %59 : vector<1x1x1xf32> to vector<1x1xf32>
    %61 = vector.shape_cast %60 : vector<1x1xf32> to vector<1x1xf32>
    %62 = vector.broadcast %61 : vector<1x1xf32> to vector<32x128xf32>
    %63 = arith.select %57, %62, %48 : vector<32x128xi1>, vector<32x128xf32>
    %c0_38 = arith.constant 0 : index
    %c2_39 = arith.constant 2 : index
    %c0_40 = arith.constant 0 : index
    %c0_41 = arith.constant 0 : index
    %64 = vector.load %arg2[%c0_38, %c2_39, %c0_40, %c0_41] : memref<1x4x32x128xf32, #tpu.memory_space<vmem>>, vector<1x1x32x128xf32>
    %65 = vector.shape_cast %64 : vector<1x1x32x128xf32> to vector<32x128xf32>
    %cst_42 = arith.constant 0.000000e+00 : f32
    %66 = vector.broadcast %cst_42 : f32 to vector<32x128xf32>
    %67 = arith.select %11, %65, %66 : vector<32x128xi1>, vector<32x128xf32>
    %68 = arith.subf %67, %30 : vector<32x128xf32>
    %69 = math.exp %68 : vector<32x128xf32>
    %70 = arith.addf %55, %69 : vector<32x128xf32>
    %c2_i32 = arith.constant 2 : i32
    %71 = vector.broadcast %c2_i32 : i32 to vector<32x128xi32>
    %72 = arith.cmpi eq, %1, %71 : vector<32x128xi32>
    %73 = arith.select %72, %67, %58 : vector<32x128xi1>, vector<32x128xf32>
    %c2_43 = arith.constant 2 : index
    %c0_44 = arith.constant 0 : index
    %c0_45 = arith.constant 0 : index
    %74 = vector.load %arg4[%c2_43, %c0_44, %c0_45] : memref<4x1x1xf32, #tpu.memory_space<vmem>>, vector<1x1x1xf32>
    %75 = vector.shape_cast %74 : vector<1x1x1xf32> to vector<1x1xf32>
    %76 = vector.shape_cast %75 : vector<1x1xf32> to vector<1x1xf32>
    %77 = vector.broadcast %76 : vector<1x1xf32> to vector<32x128xf32>
    %78 = arith.select %72, %77, %63 : vector<32x128xi1>, vector<32x128xf32>
    %c0_46 = arith.constant 0 : index
    %c3_47 = arith.constant 3 : index
    %c0_48 = arith.constant 0 : index
    %c0_49 = arith.constant 0 : index
    %79 = vector.load %arg2[%c0_46, %c3_47, %c0_48, %c0_49] : memref<1x4x32x128xf32, #tpu.memory_space<vmem>>, vector<1x1x32x128xf32>
    %80 = vector.shape_cast %79 : vector<1x1x32x128xf32> to vector<32x128xf32>
    %cst_50 = arith.constant 0.000000e+00 : f32
    %81 = vector.broadcast %cst_50 : f32 to vector<32x128xf32>
    %82 = arith.select %11, %80, %81 : vector<32x128xi1>, vector<32x128xf32>
    %83 = arith.subf %82, %30 : vector<32x128xf32>
    %84 = math.exp %83 : vector<32x128xf32>
    %85 = arith.addf %70, %84 : vector<32x128xf32>
    %c3_i32 = arith.constant 3 : i32
    %86 = vector.broadcast %c3_i32 : i32 to vector<32x128xi32>
    %87 = arith.cmpi eq, %1, %86 : vector<32x128xi32>
    %88 = arith.select %87, %82, %73 : vector<32x128xi1>, vector<32x128xf32>
    %c3_51 = arith.constant 3 : index
    %c0_52 = arith.constant 0 : index
    %c0_53 = arith.constant 0 : index
    %89 = vector.load %arg4[%c3_51, %c0_52, %c0_53] : memref<4x1x1xf32, #tpu.memory_space<vmem>>, vector<1x1x1xf32>
    %90 = vector.shape_cast %89 : vector<1x1x1xf32> to vector<1x1xf32>
    %91 = vector.shape_cast %90 : vector<1x1xf32> to vector<1x1xf32>
    %92 = vector.broadcast %91 : vector<1x1xf32> to vector<32x128xf32>
    %93 = arith.select %87, %92, %78 : vector<32x128xi1>, vector<32x128xf32>
    %cst_54 = arith.constant 0.000000e+00 : f32
    %94 = vector.broadcast %cst_54 : f32 to vector<32x128xf32>
    %95 = arith.select %11, %93, %94 : vector<32x128xi1>, vector<32x128xf32>
    %96 = math.log %85 : vector<32x128xf32>
    %97 = arith.addf %30, %96 : vector<32x128xf32>
    %98 = arith.subf %97, %88 : vector<32x128xf32>
    %99 = arith.mulf %95, %98 : vector<32x128xf32>
    %100 = vector.shape_cast %99 : vector<32x128xf32> to vector<4x8x128xf32>
    %cst_55 = arith.constant dense<0.000000e+00> : vector<8x128xf32>
    %101 = vector.multi_reduction <add>, %100, %cst_55 [0] : vector<4x8x128xf32> to vector<8x128xf32>
    %c0_56 = arith.constant 0 : index
    %c0_57 = arith.constant 0 : index
    %c0_58 = arith.constant 0 : index
    %c0_59 = arith.constant 0 : index
    %102 = vector.load %arg5[%c0_56, %c0_57, %c0_58, %c0_59] : memref<1x1x8x128xf32, #tpu.memory_space<vmem>>, vector<1x1x8x128xf32>
    %103 = vector.shape_cast %102 : vector<1x1x8x128xf32> to vector<8x128xf32>
    %104 = vector.shape_cast %101 : vector<8x128xf32> to vector<1x1x8x128xf32>
    tpu.vector_store %arg5[%c0_56, %c0_57, %c0_58, %c0_59], %104 {strides = array<i32>} : memref<1x1x8x128xf32, #tpu.memory_space<vmem>>, vector<1x1x8x128xf32>,
    %105 = vector.shape_cast %95 : vector<32x128xf32> to vector<4x8x128xf32>
    %cst_60 = arith.constant dense<0.000000e+00> : vector<8x128xf32>
    %106 = vector.multi_reduction <add>, %105, %cst_60 [0] : vector<4x8x128xf32> to vector<8x128xf32>
    %c0_61 = arith.constant 0 : index
    %c0_62 = arith.constant 0 : index
    %c0_63 = arith.constant 0 : index
    %c0_64 = arith.constant 0 : index
    %107 = vector.load %arg6[%c0_61, %c0_62, %c0_63, %c0_64] : memref<1x1x8x128xf32, #tpu.memory_space<vmem>>, vector<1x1x8x128xf32>
    %108 = vector.shape_cast %107 : vector<1x1x8x128xf32> to vector<8x128xf32>
    %109 = vector.shape_cast %106 : vector<8x128xf32> to vector<1x1x8x128xf32>
    tpu.vector_store %arg6[%c0_61, %c0_62, %c0_63, %c0_64], %109 {strides = array<i32>} : memref<1x1x8x128xf32, #tpu.memory_space<vmem>>, vector<1x1x8x128xf32>,
    return
  }
  func.func @transform_0(%arg0: i32, %arg1: i32) -> (i32, i32, i32, i32) {
    %c0_i32 = arith.constant 0 : i32
    %c0_i32_0 = arith.constant 0 : i32
    %c0_i32_1 = arith.constant 0 : i32
    return %arg0, %c0_i32, %arg1, %c0_i32_0 : i32, i32, i32, i32
  }
  func.func @transform_1(%arg0: i32, %arg1: i32) -> (i32, i32, i32, i32) {
    %c0_i32 = arith.constant 0 : i32
    %c0_i32_0 = arith.constant 0 : i32
    %c0_i32_1 = arith.constant 0 : i32
    return %arg0, %c0_i32, %arg1, %c0_i32_0 : i32, i32, i32, i32
  }
  func.func @transform_2(%arg0: i32, %arg1: i32) -> (i32, i32, i32) {
    %c0_i32 = arith.constant 0 : i32
    %c0_i32_0 = arith.constant 0 : i32
    %c0_i32_1 = arith.constant 0 : i32
    %c0_i32_2 = arith.constant 0 : i32
    return %c0_i32, %c0_i32_0, %c0_i32_1 : i32, i32, i32
  }
  func.func @transform_3(%arg0: i32, %arg1: i32) -> (i32, i32, i32, i32) {
    %c0_i32 = arith.constant 0 : i32
    %c0_i32_0 = arith.constant 0 : i32
    %c0_i32_1 = arith.constant 0 : i32
    return %arg0, %arg1, %c0_i32, %c0_i32_0 : i32, i32, i32, i32
  }
  func.func @transform_4(%arg0: i32, %arg1: i32) -> (i32, i32, i32, i32) {
    %c0_i32 = arith.constant 0 : i32
    %c0_i32_0 = arith.constant 0 : i32
    %c0_i32_1 = arith.constant 0 : i32
    return %arg0, %arg1, %c0_i32, %c0_i32_0 : i32, i32, i32, i32
  }
}

</mosaic_0001>

<llo_original>
// kernel: na_segmenter_loss.1
$region0: #{na_segmenter_loss.1}
  #allocation0 [shape = 'u32[]', space=smem, size = 0x4, offset = 0x4, fixed_abs, tag = 'smem constant byte address 0x4 - core index']
  #allocation1 [shape = 'u32[144,128]{1,0:T(1,128)}', space=vmem, size = 0x12000, scoped, tag = 'internal scratch']
  %s0 = inlined_call_operand.vmem [shape: f32[2,4,32,128], index: 0, kind: input, shape index: {}]
  %s1 = inlined_call_operand.vmem [shape: s32[2,1,32,128], index: 1, kind: input, shape index: {}]
  %s2 = inlined_call_operand.vmem [shape: f32[4,1,1], index: 2, kind: input, shape index: {}]
  %s3 = inlined_call_operand.vmem [shape: f32[2,1,8,128], index: 3, kind: output, shape index: {0}]
  %s4 = inlined_call_operand.vmem [shape: f32[2,1,8,128], index: 4, kind: output, shape index: {1}]
  %5 = xla_tuple %s3, %s4
  %s6 = sld [smem:[#allocation0]]
  $region53: #{na_segmenter_loss.1} parent=0
    _
  %s8 = ssub.s32 1, %s6
  %s9 = scalar_select 0, %s8, %s6
  loop: start=0, step=1, limit=4
  $region2: #{na_segmenter_loss.1} parent=0 // loop_pre_header
    _
  $region3: #{na_segmenter_loss.1} parent=0 // loop_header
    %s11 = sphi 0, %s15
    %p12 = scmp.ge.s32.totalorder %s11, 4
    %s18 = sphi 0, %s30
    %s19 = sphi 0, %s26
    %s20 = sphi 0, %s18
    %s21 = sphi 0, %s19
    %s22 = sphi 0, %s20
    %s23 = sphi 0, %s21
    %s35 = sphi 0, %s37
    %s38 = sphi 0, %s35
    %s39 = sphi 0, %s38
    %s55 = sphi 0, %s39
    %s63 = sphi 0, %s65
    %s66 = sphi 0, %s63
    %s67 = sphi 0, %s66
    %s83 = sphi 0, %s67
    %s87 = sphi 0, %s87
    %s89 = sphi 0, %s87
    %s90 = sphi 0, %s89
    %s104 = sphi 0, %s90
    %s112 = sphi 0, %s114
    %s115 = sphi 0, %s112
    %s116 = sphi 0, %s115
    %s132 = sphi 0, %s116
    %s140 = sphi 0, %s142
    %s143 = sphi 0, %s140
    %s144 = sphi 0, %s143
    %s160 = sphi 0, %s144
  $region4: #{na_segmenter_loss.1} parent=0 // loop_header_branch
    %14 = sbr.rel (%p12) target = $region8
  $region5: #{na_segmenter_loss.1} parent=0 // loop_body
    %s16 = ssub.s32 %s11, 1
    %s17 = ssub.s32 %s11, 2
    %s24 = sadd.s32 1, %s19
    %p25 = scmp.ge.s32.totalorder %s24, 1
    %s26 = scalar_select %p25, 0, %s24
    %s27 = sadd.s32 1, %s18
    %s28 = scalar_select %p25, %s27, %s18
    %p29 = scmp.ge.s32.totalorder %s28, 2
    %s30 = scalar_select %p29, 0, %s28
    %s31 = ssub.s32 %s18, %s30
    %s32 = ssub.s32 %s19, %s26
    %s33 = sor.u32 %s31, %s32
    %p34 = scmp.eq.s32.totalorder %s33, 0
    %s36 = sadd.s32 %s35, 1
    %s37 = scalar_select %p34, %s35, %s36
    %p40 = pneg %p34
    %p41 = scmp.eq.s32.totalorder %s11, 1
    %p42 = por %p40, %p41
    %p43 = scmp.ne.s32.totalorder %s35, %s38
    %p44 = scmp.eq.s32.totalorder %s11, 0
    %p45 = por %p43, %p44
    %p46 = scmp.ne.s32.totalorder %s35, %s38
    %p47 = scmp.eq.s32.totalorder %s16, 1
    %p48 = por %p46, %p47
    %p49 = scmp.ne.s32.totalorder %s38, %s39
    %p50 = scmp.eq.s32.totalorder %s16, 0
    %p51 = por %p49, %p50
    %p52 = scmp.ne.s32.totalorder %s38, %s39
    %p53 = scmp.eq.s32.totalorder %s17, 1
    %p54 = por %p52, %p53
    %p56 = scmp.ne.s32.totalorder %s39, %s55
    %p57 = scmp.eq.s32.totalorder %s17, 0
    %p58 = por %p56, %p57
    %s59 = ssub.s32 %s18, %s30
    %s60 = ssub.s32 %s19, %s26
    %s61 = sor.u32 %s59, %s60
    %p62 = scmp.eq.s32.totalorder %s61, 0
    %s64 = sadd.s32 %s63, 1
    %s65 = scalar_select %p62, %s63, %s64
    %p68 = pneg %p62
    %p69 = scmp.eq.s32.totalorder %s11, 1
    %p70 = por %p68, %p69
    %p71 = scmp.ne.s32.totalorder %s63, %s66
    %p72 = scmp.eq.s32.totalorder %s11, 0
    %p73 = por %p71, %p72
    %p74 = scmp.ne.s32.totalorder %s63, %s66
    %p75 = scmp.eq.s32.totalorder %s16, 1
    %p76 = por %p74, %p75
    %p77 = scmp.ne.s32.totalorder %s66, %s67
    %p78 = scmp.eq.s32.totalorder %s16, 0
    %p79 = por %p77, %p78
    %p80 = scmp.ne.s32.totalorder %s66, %s67
    %p81 = scmp.eq.s32.totalorder %s17, 1
    %p82 = por %p80, %p81
    %p84 = scmp.ne.s32.totalorder %s67, %s83
    %p85 = scmp.eq.s32.totalorder %s17, 0
    %p86 = por %p84, %p85
    %s88 = sadd.s32 %s87, 1
    %p91 = scmp.eq.s32.totalorder %s11, 1
    %p92 = scmp.ne.s32.totalorder %s87, %s89
    %p93 = scmp.eq.s32.totalorder %s11, 0
    %p94 = por %p92, %p93
    %p95 = scmp.ne.s32.totalorder %s87, %s89
    %p96 = scmp.eq.s32.totalorder %s16, 1
    %p97 = por %p95, %p96
    %p98 = scmp.ne.s32.totalorder %s89, %s90
    %p99 = scmp.eq.s32.totalorder %s16, 0
    %p100 = por %p98, %p99
    %p101 = scmp.ne.s32.totalorder %s89, %s90
    %p102 = scmp.eq.s32.totalorder %s17, 1
    %p103 = por %p101, %p102
    %p105 = scmp.ne.s32.totalorder %s90, %s104
    %p106 = scmp.eq.s32.totalorder %s17, 0
    %p107 = por %p105, %p106
    %s108 = ssub.s32 %s18, %s30
    %s109 = ssub.s32 %s19, %s26
    %s110 = sor.u32 %s108, %s109
    %p111 = scmp.eq.s32.totalorder %s110, 0
    %s113 = sadd.s32 %s112, 1
    %s114 = scalar_select %p111, %s112, %s113
    %p117 = pneg %p111
    %p118 = scmp.eq.s32.totalorder %s11, 1
    %p119 = por %p117, %p118
    %p120 = scmp.ne.s32.totalorder %s112, %s115
    %p121 = scmp.eq.s32.totalorder %s11, 0
    %p122 = por %p120, %p121
    %p123 = scmp.ne.s32.totalorder %s112, %s115
    %p124 = scmp.eq.s32.totalorder %s16, 1
    %p125 = por %p123, %p124
    %p126 = scmp.ne.s32.totalorder %s115, %s116
    %p127 = scmp.eq.s32.totalorder %s16, 0
    %p128 = por %p126, %p127
    %p129 = scmp.ne.s32.totalorder %s115, %s116
    %p130 = scmp.eq.s32.totalorder %s17, 1
    %p131 = por %p129, %p130
    %p133 = scmp.ne.s32.totalorder %s116, %s132
    %p134 = scmp.eq.s32.totalorder %s17, 0
    %p135 = por %p133, %p134
    %s136 = ssub.s32 %s18, %s30
    %s137 = ssub.s32 %s19, %s26
    %s138 = sor.u32 %s136, %s137
    %p139 = scmp.eq.s32.totalorder %s138, 0
    %s141 = sadd.s32 %s140, 1
    %s142 = scalar_select %p139, %s140, %s141
    %p145 = pneg %p139
    %p146 = scmp.eq.s32.totalorder %s11, 1
    %p147 = por %p145, %p146
    %p148 = scmp.ne.s32.totalorder %s140, %s143
    %p149 = scmp.eq.s32.totalorder %s11, 0
    %p150 = por %p148, %p149
    %p151 = scmp.ne.s32.totalorder %s140, %s143
    %p152 = scmp.eq.s32.totalorder %s16, 1
    %p153 = por %p151, %p152
    %p154 = scmp.ne.s32.totalorder %s143, %s144
    %p155 = scmp.eq.s32.totalorder %s16, 0
    %p156 = por %p154, %p155
    %p157 = scmp.ne.s32.totalorder %s143, %s144
    %p158 = scmp.eq.s32.totalorder %s17, 1
    %p159 = por %p157, %p158
    %p161 = scmp.ne.s32.totalorder %s144, %s160
    %p162 = scmp.eq.s32.totalorder %s17, 0
    %p163 = por %p161, %p162
    %p164 = scmp.le.s32.totalorder 1, %s11
    %p165 = scmp.lt.s32.totalorder %s11, 3
    %p166 = pnand %p164, %p165
    %p167 = pneg %p166
    // Predicated region
    $region9: #{na_segmenter_loss.1} parent=5 // pred_check
      _
    $region10: #{na_segmenter_loss.1} parent=5 // pred_check_branch
      %169 = sbr.rel (%p166) target = $region12
    $region11: #{na_segmenter_loss.1} parent=5 // pred_region
      %s170 = ssub.s32 %s11, 1
      // Predicated region
      $region13: #{na_segmenter_loss.1} parent=11 // pred_check
        %p171 = pneg %p100
      $region14: #{na_segmenter_loss.1} parent=11 // pred_check_branch
        %173 = sbr.rel (%p171) target = $region16
      $region15: #{na_segmenter_loss.1} parent=11 // pred_region
        _
      $region16: #{na_segmenter_loss.1} parent=11 // pred_fallthru
        _
    $region12: #{na_segmenter_loss.1} parent=5 // pred_fallthru
      _
    %p174 = scmp.lt.s32.totalorder %s11, 2
    // Predicated region
    $region17: #{na_segmenter_loss.1} parent=5 // pred_check
      %p175 = pneg %p174
    $region18: #{na_segmenter_loss.1} parent=5 // pred_check_branch
      %177 = sbr.rel (%p175) target = $region20
    $region19: #{na_segmenter_loss.1} parent=5 // pred_region
      // Predicated region
      $region21: #{na_segmenter_loss.1} parent=19 // pred_check
        %p178 = pneg %p45
      $region22: #{na_segmenter_loss.1} parent=19 // pred_check_branch
        %180 = sbr.rel (%p178) target = $region24
      $region23: #{na_segmenter_loss.1} parent=19 // pred_region
        %s181 = smul.u32 4, %s19
        %p182 = scmp.lt.s32.totalorder %s18, 1
        %s183 = scalar_select %p182, %s18, 1
        %p184 = scmp.lt.s32.totalorder %s181, 3
        %s185 = scalar_select %p184, %s181, 3
        %s186 = smul.addr %s183, 16
        %s187 = sadd.s32 %s185, %s186
        %s188 = smul.addr %s187, 8
        %s189 = scalar_lea.vmem %s0, %s188
        %s190 = smul.u32 4, %s19
      $region24: #{na_segmenter_loss.1} parent=19 // pred_fallthru
        _
      // Predicated region
      $region25: #{na_segmenter_loss.1} parent=19 // pred_check
        %p191 = pneg %p73
      $region26: #{na_segmenter_loss.1} parent=19 // pred_check_branch
        %193 = sbr.rel (%p191) target = $region28
      $region27: #{na_segmenter_loss.1} parent=19 // pred_region
        %s194 = smul.u32 4, %s19
        %p195 = scmp.lt.s32.totalorder %s18, 1
        %s196 = scalar_select %p195, %s18, 1
        %p197 = scmp.lt.s32.totalorder %s194, 3
        %s198 = scalar_select %p197, %s194, 3
        %s199 = smul.addr %s196, 4
        %s200 = sadd.s32 %s198, %s199
        %s201 = smul.addr %s200, 8
        %s202 = scalar_lea.vmem %s1, %s201
        %s203 = smul.u32 4, %s19
      $region28: #{na_segmenter_loss.1} parent=19 // pred_fallthru
        _
    $region20: #{na_segmenter_loss.1} parent=5 // pred_fallthru
      _
    %p204 = scmp.le.s32.totalorder 1, %s11
    %p205 = scmp.lt.s32.totalorder %s11, 3
    %p206 = pnand %p204, %p205
    %p207 = pneg %p206
    // Predicated region
    $region29: #{na_segmenter_loss.1} parent=5 // pred_check
      _
    $region30: #{na_segmenter_loss.1} parent=5 // pred_check_branch
      %209 = sbr.rel (%p206) target = $region32
    $region31: #{na_segmenter_loss.1} parent=5 // pred_region
      %s210 = ssub.s32 %s11, 1
      %s211 = smul.u32 4, %s21
      %p212 = scmp.lt.s32.totalorder %s20, 1
      %s213 = scalar_select %p212, %s20, 1
      %p214 = scmp.lt.s32.totalorder %s211, 3
      %s215 = scalar_select %p214, %s211, 3
      %s216 = smul.addr %s213, 16
      %s217 = sadd.s32 %s215, %s216
      %s218 = smul.addr %s217, 8
      %s219 = scalar_lea.vmem %s0, %s218
      %p220 = pneg %p51
      %p221 = pneg %p48
      %s222 = smul.u32 4, %s21
      %p223 = scmp.lt.s32.totalorder %s20, 1
      %s224 = scalar_select %p223, %s20, 1
      %p225 = scmp.lt.s32.totalorder %s222, 3
      %s226 = scalar_select %p225, %s222, 3
      %s227 = smul.addr %s224, 4
      %s228 = sadd.s32 %s226, %s227
      %s229 = smul.addr %s228, 8
      %s230 = scalar_lea.vmem %s1, %s229
      %p231 = pneg %p79
      %p232 = pneg %p76
      %p233 = pneg %p100
      %p234 = pneg %p97
      %p235 = pneg %p128
      %p236 = pneg %p125
      %p237 = scmp.lt.s32.totalorder %s20, 1
      %s238 = scalar_select %p237, %s20, 1
      %p239 = scmp.lt.s32.totalorder %s21, 0
      %s240 = scalar_select %p239, %s21, 0
      %s241 = sadd.s32 %s240, %s238
      %s242 = smul.addr %s241, 8
      %s243 = scalar_lea.vmem %s3, %s242
      %p244 = pneg %p156
      %p245 = pneg %p153
      %p246 = scmp.lt.s32.totalorder %s20, 1
      %s247 = scalar_select %p246, %s20, 1
      %p248 = scmp.lt.s32.totalorder %s21, 0
      %s249 = scalar_select %p248, %s21, 0
      %s250 = sadd.s32 %s249, %s247
      %s251 = smul.addr %s250, 8
      %s252 = scalar_lea.vmem %s4, %s251
      %s253 = smul.u32 4, %s21
      %p254 = scmp.lt.s32.totalorder %s20, 1
      %s255 = scalar_select %p254, %s20, 1
      %p256 = scmp.lt.s32.totalorder %s253, 3
      %s257 = scalar_select %p256, %s253, 3
      %s258 = smul.addr %s255, 16
      %s259 = sadd.s32 %s257, %s258
      %s260 = smul.addr %s259, 8
      %s261 = scalar_lea.vmem %s0, %s260
      %s262 = smul.u32 4, %s21
      %s263 = smul.u32 4, %s21
      %p264 = scmp.lt.s32.totalorder %s20, 1
      %s265 = scalar_select %p264, %s20, 1
      %p266 = scmp.lt.s32.totalorder %s263, 3
      %s267 = scalar_select %p266, %s263, 3
      %s268 = smul.addr %s265, 4
      %s269 = sadd.s32 %s267, %s268
      %s270 = smul.addr %s269, 8
      %s271 = scalar_lea.vmem %s1, %s270
      %s272 = smul.u32 4, %s21
      %p273 = scmp.lt.s32.totalorder %s20, 1
      %s274 = scalar_select %p273, %s20, 1
      %p275 = scmp.lt.s32.totalorder %s21, 0
      %s276 = scalar_select %p275, %s21, 0
      %s277 = sadd.s32 %s276, %s274
      %s278 = smul.addr %s277, 8
      %s279 = scalar_lea.vmem %s3, %s278
      %p280 = scmp.lt.s32.totalorder %s20, 1
      %s281 = scalar_select %p280, %s20, 1
      %p282 = scmp.lt.s32.totalorder %s21, 0
      %s283 = scalar_select %p282, %s21, 0
      %s284 = sadd.s32 %s283, %s281
      %s285 = smul.addr %s284, 8
      %s286 = scalar_lea.vmem %s4, %s285
      %v287 = vld [vmem:[%s271] sm:$0xff]
      %v288 = vld [vmem:[%s271 + $0x8] sm:$0xff]
      %v289 = vld [vmem:[%s271 + $0x10] sm:$0xff]
      %v290 = vld [vmem:[%s271 + $0x18] sm:$0xff]
      %s291 = smul.u32 %s21, 4096
      %v292 = vlaneseq
      %v293 = vshrl.u32 %v292, 7
      %v294 = vadd.s32 %v293, 8
      %v295 = vadd.s32 %v293, 16
      %v296 = vadd.s32 %v293, 24
      %v297 = vlaneseq
      %v298 = vand.u32 %v297, 127
      %v299 = vmul.u32 %v293, 128
      %v300 = vmul.u32 %v294, 128
      %v301 = vmul.u32 %v295, 128
      %v302 = vmul.u32 %v296, 128
      %v303 = vstv %s291
      %v304 = vadd.s32 %v303, %v299
      %v305 = vadd.s32 %v303, %v300
      %v306 = vadd.s32 %v303, %v301
      %v307 = vadd.s32 %v303, %v302
      %v308 = vadd.s32 %v304, %v298
      %v309 = vadd.s32 %v305, %v298
      %v310 = vadd.s32 %v306, %v298
      %v311 = vadd.s32 %v307, %v298
      %vm312 = vcmp.lt.s32.totalorder %v308, 256
      %vm313 = vcmp.lt.s32.totalorder %v309, 256
      %vm314 = vcmp.lt.s32.totalorder %v310, 256
      %vm315 = vcmp.lt.s32.totalorder %v311, 256
      %v316 = vld [vmem:[%s261] sm:$0xff]
      %v317 = vld [vmem:[%s261 + $0x8] sm:$0xff]
      %v318 = vld [vmem:[%s261 + $0x10] sm:$0xff]
      %v319 = vld [vmem:[%s261 + $0x18] sm:$0xff]
      %v320 = vsel %vm312, %v316, 0.0
      %v321 = vsel %vm313, %v317, 0.0
      %v322 = vsel %vm314, %v318, 0.0
      %v323 = vsel %vm315, %v319, 0.0
      %s324 = scalar_lea.vmem %s261, 32
      %v325 = vld [vmem:[%s324] sm:$0xff]
      %v326 = vld [vmem:[%s324 + $0x8] sm:$0xff]
      %v327 = vld [vmem:[%s324 + $0x10] sm:$0xff]
      %v328 = vld [vmem:[%s324 + $0x18] sm:$0xff]
      %v329 = vsel %vm312, %v325, 0.0
      %v330 = vsel %vm313, %v326, 0.0
      %v331 = vsel %vm314, %v327, 0.0
      %v332 = vsel %vm315, %v328, 0.0
      %v333 = vmax.f32 %v320, %v329
      %v334 = vmax.f32 %v321, %v330
      %v335 = vmax.f32 %v322, %v331
      %v336 = vmax.f32 %v323, %v332
      %s337 = scalar_lea.vmem %s261, 64
      %v338 = vld [vmem:[%s337] sm:$0xff]
      %v339 = vld [vmem:[%s337 + $0x8] sm:$0xff]
      %v340 = vld [vmem:[%s337 + $0x10] sm:$0xff]
      %v341 = vld [vmem:[%s337 + $0x18] sm:$0xff]
      %v342 = vsel %vm312, %v338, 0.0
      %v343 = vsel %vm313, %v339, 0.0
      %v344 = vsel %vm314, %v340, 0.0
      %v345 = vsel %vm315, %v341, 0.0
      %v346 = vmax.f32 %v333, %v342
      %v347 = vmax.f32 %v334, %v343
      %v348 = vmax.f32 %v335, %v344
      %v349 = vmax.f32 %v336, %v345
      %s350 = scalar_lea.vmem %s261, 96
      %v351 = vld [vmem:[%s350] sm:$0xff]
      %v352 = vld [vmem:[%s350 + $0x8] sm:$0xff]
      %v353 = vld [vmem:[%s350 + $0x10] sm:$0xff]
      %v354 = vld [vmem:[%s350 + $0x18] sm:$0xff]
      %v355 = vsel %vm312, %v351, 0.0
      %v356 = vsel %vm313, %v352, 0.0
      %v357 = vsel %vm314, %v353, 0.0
      %v358 = vsel %vm315, %v354, 0.0
      %v359 = vmax.f32 %v346, %v355
      %v360 = vmax.f32 %v347, %v356
      %v361 = vmax.f32 %v348, %v357
      %v362 = vmax.f32 %v349, %v358
      %v363 = vsub.f32 %v320, %v359
      %v364 = vsub.f32 %v321, %v360
      %v365 = vsub.f32 %v322, %v361
      %v366 = vsub.f32 %v323, %v362
      %v367 = vmul.f32 %v363, 1.442695
      %v368 = vpow.pop %v367
      %v369 = vmul.f32 %v364, 1.442695
      %v370 = vpow.pop %v369
      %v371 = vmul.f32 %v365, 1.442695
      %v372 = vpow.pop %v371
      %v373 = vmul.f32 %v366, 1.442695
      %v374 = vpow.pop %v373
      %v375 = vadd.f32 %v368, 0.0
      %v376 = vadd.f32 %v370, 0.0
      %v377 = vadd.f32 %v372, 0.0
      %v378 = vadd.f32 %v374, 0.0
      %vm379 = vcmp.eq.s32.totalorder %v287, 0
      %vm380 = vcmp.eq.s32.totalorder %v288, 0
      %vm381 = vcmp.eq.s32.totalorder %v289, 0
      %vm382 = vcmp.eq.s32.totalorder %v290, 0
      %v383 = vsel %vm379, %v320, 0.0
      %v384 = vsel %vm380, %v321, 0.0
      %v385 = vsel %vm381, %v322, 0.0
      %v386 = vsel %vm382, %v323, 0.0
      %v387 = vld [vmem:[%s2] sm:$0x1]
      %v389 = vlaneseq
      %v390 = vshrl.u32 %v389, 7
      %v391 = vsub.s32 0, %v390
      %v392 = vrot.slane %v387, %v391
      %393 = vset.pattern.permute.xlu0 0
      %394 = vperm.xlu0 %393, %v392
      %v395 = vpop.permute.xlu0 %394
      %v397 = vsel %vm379, %v395, 0.0
      %v398 = vsel %vm380, %v395, 0.0
      %v399 = vsel %vm381, %v395, 0.0
      %v400 = vsel %vm382, %v395, 0.0
      %v401 = vsub.f32 %v329, %v359
      %v402 = vsub.f32 %v330, %v360
      %v403 = vsub.f32 %v331, %v361
      %v404 = vsub.f32 %v332, %v362
      %v405 = vmul.f32 %v401, 1.442695
      %v406 = vpow.pop %v405
      %v407 = vmul.f32 %v402, 1.442695
      %v408 = vpow.pop %v407
      %v409 = vmul.f32 %v403, 1.442695
      %v410 = vpow.pop %v409
      %v411 = vmul.f32 %v404, 1.442695
      %v412 = vpow.pop %v411
      %v413 = vadd.f32 %v375, %v406
      %v414 = vadd.f32 %v376, %v408
      %v415 = vadd.f32 %v377, %v410
      %v416 = vadd.f32 %v378, %v412
      %vm417 = vcmp.eq.s32.totalorder %v287, 1
      %vm418 = vcmp.eq.s32.totalorder %v288, 1
      %vm419 = vcmp.eq.s32.totalorder %v289, 1
      %vm420 = vcmp.eq.s32.totalorder %v290, 1
      %v421 = vsel %vm417, %v329, %v383
      %v422 = vsel %vm418, %v330, %v384
      %v423 = vsel %vm419, %v331, %v385
      %v424 = vsel %vm420, %v332, %v386
      %s425 = scalar_lea.vmem %s2, 1
      %v426 = vld [vmem:[%s425] sm:$0x1]
      %v428 = vlaneseq
      %v429 = vshrl.u32 %v428, 7
      %v430 = vsub.s32 0, %v429
      %v431 = vrot.slane %v426, %v430
      %432 = vset.pattern.permute.xlu0 0
      %433 = vperm.xlu0 %432, %v431
      %v434 = vpop.permute.xlu0 %433
      %v436 = vsel %vm417, %v434, %v397
      %v437 = vsel %vm418, %v434, %v398
      %v438 = vsel %vm419, %v434, %v399
      %v439 = vsel %vm420, %v434, %v400
      %v440 = vsub.f32 %v342, %v359
      %v441 = vsub.f32 %v343, %v360
      %v442 = vsub.f32 %v344, %v361
      %v443 = vsub.f32 %v345, %v362
      %v444 = vmul.f32 %v440, 1.442695
      %v445 = vpow.pop %v444
      %v446 = vmul.f32 %v441, 1.442695
      %v447 = vpow.pop %v446
      %v448 = vmul.f32 %v442, 1.442695
      %v449 = vpow.pop %v448
      %v450 = vmul.f32 %v443, 1.442695
      %v451 = vpow.pop %v450
      %v452 = vadd.f32 %v413, %v445
      %v453 = vadd.f32 %v414, %v447
      %v454 = vadd.f32 %v415, %v449
      %v455 = vadd.f32 %v416, %v451
      %vm456 = vcmp.eq.s32.totalorder %v287, 2
      %vm457 = vcmp.eq.s32.totalorder %v288, 2
      %vm458 = vcmp.eq.s32.totalorder %v289, 2
      %vm459 = vcmp.eq.s32.totalorder %v290, 2
      %v460 = vsel %vm456, %v342, %v421
      %v461 = vsel %vm457, %v343, %v422
      %v462 = vsel %vm458, %v344, %v423
      %v463 = vsel %vm459, %v345, %v424
      %s464 = scalar_lea.vmem %s2, 2
      %v465 = vld [vmem:[%s464] sm:$0x1]
      %v467 = vlaneseq
      %v468 = vshrl.u32 %v467, 7
      %v469 = vsub.s32 0, %v468
      %v470 = vrot.slane %v465, %v469
      %471 = vset.pattern.permute.xlu0 0
      %472 = vperm.xlu0 %471, %v470
      %v473 = vpop.permute.xlu0 %472
      %v475 = vsel %vm456, %v473, %v436
      %v476 = vsel %vm457, %v473, %v437
      %v477 = vsel %vm458, %v473, %v438
      %v478 = vsel %vm459, %v473, %v439
      %v479 = vsub.f32 %v355, %v359
      %v480 = vsub.f32 %v356, %v360
      %v481 = vsub.f32 %v357, %v361
      %v482 = vsub.f32 %v358, %v362
      %v483 = vmul.f32 %v479, 1.442695
      %v484 = vpow.pop %v483
      %v485 = vmul.f32 %v480, 1.442695
      %v486 = vpow.pop %v485
      %v487 = vmul.f32 %v481, 1.442695
      %v488 = vpow.pop %v487
      %v489 = vmul.f32 %v482, 1.442695
      %v490 = vpow.pop %v489
      %v491 = vadd.f32 %v452, %v484
      %v492 = vadd.f32 %v453, %v486
      %v493 = vadd.f32 %v454, %v488
      %v494 = vadd.f32 %v455, %v490
      %vm495 = vcmp.eq.s32.totalorder %v287, 3
      %vm496 = vcmp.eq.s32.totalorder %v288, 3
      %vm497 = vcmp.eq.s32.totalorder %v289, 3
      %vm498 = vcmp.eq.s32.totalorder %v290, 3
      %v499 = vsel %vm495, %v355, %v460
      %v500 = vsel %vm496, %v356, %v461
      %v501 = vsel %vm497, %v357, %v462
      %v502 = vsel %vm498, %v358, %v463
      %s503 = scalar_lea.vmem %s2, 3
      %v504 = vld [vmem:[%s503] sm:$0x1]
      %v506 = vlaneseq
      %v507 = vshrl.u32 %v506, 7
      %v508 = vsub.s32 0, %v507
      %v509 = vrot.slane %v504, %v508
      %510 = vset.pattern.permute.xlu0 0
      %511 = vperm.xlu0 %510, %v509
      %v512 = vpop.permute.xlu0 %511
      %v514 = vsel %vm495, %v512, %v475
      %v515 = vsel %vm496, %v512, %v476
      %v516 = vsel %vm497, %v512, %v477
      %v517 = vsel %vm498, %v512, %v478
      %v518 = vsel %vm312, %v514, 0.0
      %v519 = vsel %vm313, %v515, 0.0
      %v520 = vsel %vm314, %v516, 0.0
      %v521 = vsel %vm315, %v517, 0.0
      %v522 = vlog2.pop %v491
      %v523 = vmul.f32 %v522, 0.6931472
      %v524 = vlog2.pop %v492
      %v525 = vmul.f32 %v524, 0.6931472
      %v526 = vlog2.pop %v493
      %v527 = vmul.f32 %v526, 0.6931472
      %v528 = vlog2.pop %v494
      %v529 = vmul.f32 %v528, 0.6931472
      %v530 = vadd.f32 %v359, %v523
      %v531 = vadd.f32 %v360, %v525
      %v532 = vadd.f32 %v361, %v527
      %v533 = vadd.f32 %v362, %v529
      %v534 = vsub.f32 %v530, %v499
      %v535 = vsub.f32 %v531, %v500
      %v536 = vsub.f32 %v532, %v501
      %v537 = vsub.f32 %v533, %v502
      %v538 = vmul.f32 %v518, %v534
      %v539 = vmul.f32 %v519, %v535
      %v540 = vmul.f32 %v520, %v536
      %v541 = vmul.f32 %v521, %v537
      %v542 = vadd.f32 %v538, %v539
      %v543 = vadd.f32 %v542, %v540
      %v544 = vadd.f32 %v543, %v541
      %545 = vst [vmem:[%s279] sm:$0xff] %v544
      %v546 = vadd.f32 %v518, %v519
      %v547 = vadd.f32 %v546, %v520
      %v548 = vadd.f32 %v547, %v521
      %549 = vst [vmem:[%s286] sm:$0xff] %v548
      %p550 = scmp.lt.s32.totalorder %s20, 1
      %s551 = scalar_select %p550, %s20, 1
      %p552 = scmp.lt.s32.totalorder %s21, 0
      %s553 = scalar_select %p552, %s21, 0
      %s554 = sadd.s32 %s553, %s551
      %s555 = smul.addr %s554, 8
      %s556 = scalar_lea.vmem %s3, %s555
      %p557 = scmp.lt.s32.totalorder %s20, 1
      %s558 = scalar_select %p557, %s20, 1
      %p559 = scmp.lt.s32.totalorder %s21, 0
      %s560 = scalar_select %p559, %s21, 0
      %s561 = sadd.s32 %s560, %s558
      %s562 = smul.addr %s561, 8
      %s563 = scalar_lea.vmem %s4, %s562
      // Predicated region
      $region33: #{na_segmenter_loss.1} parent=31 // pred_check
        %p564 = pneg %p125
      $region34: #{na_segmenter_loss.1} parent=31 // pred_check_branch
        %566 = sbr.rel (%p564) target = $region36
      $region35: #{na_segmenter_loss.1} parent=31 // pred_region
        _
      $region36: #{na_segmenter_loss.1} parent=31 // pred_fallthru
        _
      // Predicated region
      $region37: #{na_segmenter_loss.1} parent=31 // pred_check
        %p567 = pneg %p153
      $region38: #{na_segmenter_loss.1} parent=31 // pred_check_branch
        %569 = sbr.rel (%p567) target = $region40
      $region39: #{na_segmenter_loss.1} parent=31 // pred_region
        _
      $region40: #{na_segmenter_loss.1} parent=31 // pred_fallthru
        _
    $region32: #{na_segmenter_loss.1} parent=5 // pred_fallthru
      _
    %p570 = scmp.le.s32.totalorder 2, %s11
    // Predicated region
    $region41: #{na_segmenter_loss.1} parent=5 // pred_check
      %p571 = pneg %p570
    $region42: #{na_segmenter_loss.1} parent=5 // pred_check_branch
      %573 = sbr.rel (%p571) target = $region44
    $region43: #{na_segmenter_loss.1} parent=5 // pred_region
      %s574 = ssub.s32 %s11, 2
      // Predicated region
      $region45: #{na_segmenter_loss.1} parent=43 // pred_check
        %p575 = pneg %p131
      $region46: #{na_segmenter_loss.1} parent=43 // pred_check_branch
        %577 = sbr.rel (%p575) target = $region48
      $region47: #{na_segmenter_loss.1} parent=43 // pred_region
        %p578 = scmp.lt.s32.totalorder %s22, 1
        %s579 = scalar_select %p578, %s22, 1
        %p580 = scmp.lt.s32.totalorder %s23, 0
        %s581 = scalar_select %p580, %s23, 0
        %s582 = sadd.s32 %s581, %s579
        %s583 = smul.addr %s582, 8
        %s584 = scalar_lea.vmem %s3, %s583
      $region48: #{na_segmenter_loss.1} parent=43 // pred_fallthru
        _
      // Predicated region
      $region49: #{na_segmenter_loss.1} parent=43 // pred_check
        %p585 = pneg %p159
      $region50: #{na_segmenter_loss.1} parent=43 // pred_check_branch
        %587 = sbr.rel (%p585) target = $region52
      $region51: #{na_segmenter_loss.1} parent=43 // pred_region
        %p588 = scmp.lt.s32.totalorder %s22, 1
        %s589 = scalar_select %p588, %s22, 1
        %p590 = scmp.lt.s32.totalorder %s23, 0
        %s591 = scalar_select %p590, %s23, 0
        %s592 = sadd.s32 %s591, %s589
        %s593 = smul.addr %s592, 8
        %s594 = scalar_lea.vmem %s4, %s593
      $region52: #{na_segmenter_loss.1} parent=43 // pred_fallthru
        _
    $region44: #{na_segmenter_loss.1} parent=5 // pred_fallthru
      _
  $region6: #{na_segmenter_loss.1} parent=0 // loop_footer
    %s15 = sadd.s32 1, %s11
  $region7: #{na_segmenter_loss.1} parent=0 // loop_footer_branch
    %10 = sbr.rel target = $region3
  $region8: #{na_segmenter_loss.1} parent=0 // loop_exit
    _

</llo_original>
